<compile_context>
chip_gen: v7x
topology: tpu7x:2x2x1
jax: 0.10.0
libtpu: 0.0.40
codegen_flags: <defaults>
</compile_context>

<pallas_src>
import functools

import jax
import jax.numpy as jnp
from jax.experimental import pallas as pl
from jax.experimental.pallas import tpu as pltpu


def _round_up(v: int, m: int) -> int:
    return ((v + m - 1) // m) * m


def _global_mean_pool_kernel(batch_ref, inv_ref, x_ref, o_ref, sums_ref,
                             *, n_valid, tile_n, num_graphs, has_tail):
    # Grid = (F tiles [parallel], N tiles [arbitrary / reduction, innermost]).
    k = pl.program_id(1)

    @pl.when(k == 0)
    def _():
        sums_ref[...] = jnp.zeros_like(sums_ref)

    x = x_ref[...]                                   # (TN, TF), input dtype
    batch = batch_ref[...]                           # (1, TN) int32
    TN = x.shape[0]
    B = num_graphs

    # one_hot[b, n] = 1 iff node n of this tile belongs to graph b.
    gids = jax.lax.broadcasted_iota(jnp.int32, (B, TN), 0)       # (B, TN)
    eq = gids == batch                                            # (B, TN) bool

    if has_tail:
        # Mask the (possibly partial) last N tile: rows past N must not match
        # any graph, and x garbage (could be NaN) must not reach the MXU
        # (0 * NaN = NaN).  Pure VPU selects; only emitted when N % tile_n != 0.
        base = k * tile_n
        valid_row = (base + jax.lax.broadcasted_iota(jnp.int32, (1, TN), 1)) < n_valid
        valid_col = (base + jax.lax.broadcasted_iota(jnp.int32, (TN, 1), 0)) < n_valid
        eq = eq & valid_row
        x = jnp.where(valid_col, x, jnp.zeros_like(x))

    one_hot = eq.astype(x.dtype)                                  # {0,1} exact

    # Segment sums on the MXU with f32 accumulation.
    sums_ref[...] += jnp.dot(one_hot, x, preferred_element_type=jnp.float32)

    @pl.when(k == pl.num_programs(1) - 1)
    def _():
        # inv_ref = 1 / max(count, 1): empty graphs -> 0 rows (matches PyG).
        o_ref[...] = (sums_ref[...] * inv_ref[...]).astype(o_ref.dtype)


_VMEM_BUDGET = 24 * 1024 * 1024   # fits v7x's 32 MiB scoped default with margin


def _vmem_need_bytes(tile_n, tile_f, num_graphs, itemsize):
    b_pad = max(_round_up(num_graphs, 8), 8)
    tf_pad = max(_round_up(tile_f, 128), 128)
    x_bufs = 2 * tile_n * tf_pad * itemsize                  # double-buffered x tile
    out_bufs = 2 * b_pad * tf_pad * itemsize                 # double-buffered out block
    batch_bufs = 2 * 8 * tile_n * 4                          # (1, TN) i32, sublane-padded
    inv_bufs = 2 * 8 * 128 * 4                               # (B, 1) f32, tile-padded
    sums_scratch = b_pad * tf_pad * 4                        # f32 accumulator
    onehot_tmp = b_pad * tile_n * (4 + 4 + itemsize)         # iota + eq + cast temps
    return (x_bufs + out_bufs + batch_bufs + inv_bufs + sums_scratch
            + onehot_tmp + (1 << 20))


def _pick_tiles(N, F, num_graphs, itemsize):
    # tile_f: a 128-multiple divisor of F (prefer >= 2 F-blocks so v7x's two
    # TensorCores both get work on the parallel axis), or the full F dim when
    # F is not 128-aligned (full-extent blocks avoid any F padding).
    if F % 128 != 0:
        tf_candidates = [F]
    else:
        units = F // 128
        divisors = [d for d in range(units, 0, -1) if units % d == 0]
        tf_candidates = [d * 128 for d in divisors]                 # descending
        if units >= 2:
            multi = [t for t in tf_candidates if F // t >= 2]
            tf_candidates = multi + [F]

    # tile_n: as large as the VMEM budget allows (amortizes the ~0.35us/step
    # grid overhead on this HBM-bound kernel).  A multiple of 128 is enough on
    # all generations (v5e MXU is 128x128).
    tn_cap = max(128, _round_up(N, 128))
    tn_candidates = [t for t in (2048, 1024, 512, 256, 128) if t <= tn_cap]
    if not tn_candidates:
        tn_candidates = [128]

    for tf in tf_candidates:
        for tn in tn_candidates:
            if _vmem_need_bytes(tn, tf, num_graphs, itemsize) <= _VMEM_BUDGET:
                return tn, tf
    return tn_candidates[-1], tf_candidates[-1]


def global_mean_pool(x: jax.Array, batch: jax.Array, num_graphs: int) -> jax.Array:
    """x: [N, F], batch: [N] int -> [num_graphs, F] per-graph means."""
    N, F = x.shape
    out_dtype = x.dtype
    itemsize = jnp.dtype(x.dtype).itemsize

    tile_n, tile_f = _pick_tiles(N, F, num_graphs, itemsize)
    grid_f = F // tile_f
    grid_n = pl.cdiv(N, tile_n)
    has_tail = (N % tile_n) != 0

    batch_i32 = batch.astype(jnp.int32)
    batch_2d = batch_i32.reshape(1, N)

    # Per-graph counts: one cheap pass over the [N] batch vector in the
    # wrapper; the kernel just multiplies by the inverse in its epilogue.
    counts = jax.ops.segment_sum(jnp.ones((N,), jnp.float32), batch_i32,
                                 num_segments=num_graphs)
    inv_counts = (1.0 / jnp.maximum(counts, 1.0)).reshape(num_graphs, 1)

    kernel = functools.partial(
        _global_mean_pool_kernel,
        n_valid=N, tile_n=tile_n, num_graphs=num_graphs, has_tail=has_tail)

    need = _vmem_need_bytes(tile_n, tile_f, num_graphs, itemsize)
    vmem_limit = int(min(max(32 << 20, 2 * need), 56 << 20))

    out = pl.pallas_call(
        kernel,
        out_shape=jax.ShapeDtypeStruct((num_graphs, F), out_dtype),
        grid_spec=pltpu.PrefetchScalarGridSpec(
            num_scalar_prefetch=0,
            grid=(grid_f, grid_n),
            in_specs=[
                pl.BlockSpec((1, tile_n), lambda j, k: (0, k)),        # batch ids
                pl.BlockSpec((num_graphs, 1), lambda j, k: (0, 0)),    # 1 / counts
                pl.BlockSpec((tile_n, tile_f), lambda j, k: (k, j)),   # x tile
            ],
            out_specs=pl.BlockSpec((num_graphs, tile_f), lambda j, k: (0, j)),
            scratch_shapes=[
                pltpu.VMEM((num_graphs, tile_f), jnp.float32),         # segment sums
            ],
        ),
        compiler_params=pltpu.CompilerParams(
            dimension_semantics=("parallel", "arbitrary"),
            vmem_limit_bytes=vmem_limit,
        ),
        cost_estimate=pl.CostEstimate(
            flops=2 * num_graphs * N * F,
            transcendentals=0,
            bytes_accessed=(N * F * itemsize + N * 4
                            + num_graphs * F * itemsize + num_graphs * 4),
        ),
    )(batch_2d, inv_counts, x)

    return out


if __name__ == "__main__":
    key = jax.random.PRNGKey(0)
    N, F, B = 64, 32, 4   # 64 nodes, 32 features, 4 graphs

    x = jax.random.normal(key, (N, F), dtype=jnp.float32)
    # deterministic assignment: 16 nodes per graph (sorted, like PyG)
    batch = jnp.repeat(jnp.arange(B, dtype=jnp.int32), N // B)

    out = global_mean_pool(x, batch, num_graphs=B)
    out = jax.block_until_ready(out)

    # reference check with plain JAX segment mean
    ref_sums = jax.ops.segment_sum(x, batch, num_segments=B)
    ref_cnts = jax.ops.segment_sum(jnp.ones((N, 1), jnp.float32), batch,
                                   num_segments=B)
    ref = ref_sums / jnp.maximum(ref_cnts, 1.0)
    assert out.shape == (B, F)
    assert out.dtype == x.dtype
    assert jnp.allclose(out, ref, atol=1e-5, rtol=1e-5)

    print("KERNEL_OK")
</pallas_src>

<mosaic_0001>
module attributes {stable_mosaic.version = 11 : i64} {
  func.func @_global_mean_pool_kernel(%arg0: i32, %arg1: i32, %arg2: memref<1x128xi32, #tpu.memory_space<vmem>>, %arg3: memref<4x1xf32, #tpu.memory_space<vmem>>, %arg4: memref<128x32xf32, #tpu.memory_space<vmem>>, %arg5: memref<4x32xf32, #tpu.memory_space<vmem>>, %arg6: memref<4x32xf32, #tpu.memory_space<vmem>>) attributes {dimension_semantics = [#tpu.dimension_semantics<parallel>, #tpu.dimension_semantics<arbitrary>], iteration_bounds = array<i64: 1, 1>, scalar_prefetch = 0 : i64, scratch_operands = 1 : i64, tpu.core_type = #tpu.core_type<tc>, window_params = [{transform_indices = @transform_0, window_bounds = array<i64: 1, 128>}, {pipeline_mode = #tpu.pipeline_mode<synchronous>, transform_indices = @transform_1, window_bounds = array<i64: 4, 1>}, {transform_indices = @transform_2, window_bounds = array<i64: 128, 32>}, {transform_indices = @transform_3, window_bounds = array<i64: 4, 32>}]} {
    %c0_i32 = arith.constant 0 : i32
    %0 = arith.cmpi eq, %arg1, %c0_i32 : i32
    %1 = arith.extui %0 : i1 to i32
    %c0_i32_0 = arith.constant 0 : i32
    %2 = arith.cmpi ne, %1, %c0_i32_0 : i32
    scf.if %2 {
      %cst_12 = arith.constant 0.000000e+00 : f32
      %34 = vector.broadcast %cst_12 : f32 to vector<4x32xf32>
      %c0_13 = arith.constant 0 : index
      %c0_14 = arith.constant 0 : index
      %35 = vector.load %arg6[%c0_13, %c0_14] : memref<4x32xf32, #tpu.memory_space<vmem>>, vector<4x32xf32>
      tpu.vector_store %arg6[%c0_13, %c0_14], %34 {strides = array<i32>} : memref<4x32xf32, #tpu.memory_space<vmem>>, vector<4x32xf32>,
    } else {
    }
    %c0 = arith.constant 0 : index
    %c0_1 = arith.constant 0 : index
    %3 = vector.load %arg4[%c0, %c0_1] : memref<128x32xf32, #tpu.memory_space<vmem>>, vector<128x32xf32>
    %c0_2 = arith.constant 0 : index
    %c0_3 = arith.constant 0 : index
    %4 = vector.load %arg2[%c0_2, %c0_3] : memref<1x128xi32, #tpu.memory_space<vmem>>, vector<1x128xi32>
    %5 = tpu.iota {dimensions = array<i32: 0>} : vector<4x128xi32>
    %6 = vector.broadcast %4 : vector<1x128xi32> to vector<4x128xi32>
    %7 = arith.cmpi eq, %5, %6 : vector<4x128xi32>
    %c128_i32 = arith.constant 128 : i32
    %8 = arith.muli %arg1, %c128_i32 : i32
    %9 = tpu.iota {dimensions = array<i32: 1>} : vector<1x128xi32>
    %10 = vector.broadcast %8 : i32 to vector<1x128xi32>
    %11 = arith.addi %10, %9 : vector<1x128xi32>
    %c64_i32 = arith.constant 64 : i32
    %12 = vector.broadcast %c64_i32 : i32 to vector<1x128xi32>
    %13 = arith.cmpi slt, %11, %12 : vector<1x128xi32>
    %14 = tpu.iota {dimensions = array<i32: 0>} : vector<128x1xi32>
    %15 = vector.broadcast %8 : i32 to vector<128x1xi32>
    %16 = arith.addi %15, %14 : vector<128x1xi32>
    %c64_i32_4 = arith.constant 64 : i32
    %17 = vector.broadcast %c64_i32_4 : i32 to vector<128x1xi32>
    %18 = arith.cmpi slt, %16, %17 : vector<128x1xi32>
    %19 = vector.broadcast %13 : vector<1x128xi1> to vector<4x128xi1>
    %20 = arith.andi %7, %19 : vector<4x128xi1>
    %cst = arith.constant 0.000000e+00 : f32
    %21 = vector.broadcast %cst : f32 to vector<128x32xf32>
    %22 = vector.shape_cast %18 : vector<128x1xi1> to vector<128x1xi1>
    %23 = vector.broadcast %22 : vector<128x1xi1> to vector<128x32xi1>
    %24 = arith.select %23, %3, %21 : vector<128x32xi1>, vector<128x32xf32>
    %25 = arith.extui %20 : vector<4x128xi1> to vector<4x128xi32>
    %26 = arith.sitofp %25 : vector<4x128xi32> to vector<4x128xf32>
    %c0_5 = arith.constant 0 : index
    %c0_6 = arith.constant 0 : index
    %27 = vector.load %arg6[%c0_5, %c0_6] : memref<4x32xf32, #tpu.memory_space<vmem>>, vector<4x32xf32>
    %cst_7 = arith.constant dense<0.000000e+00> : vector<4x32xf32>
    %28 = tpu.matmul %26, %24, %cst_7 {dimension_numbers = #tpu.dot_dimension_numbers<[1], [0], [0], [1], [0, 0, 1, 1], [], []>} : vector<4x128xf32>, vector<128x32xf32>, vector<4x32xf32> -> vector<4x32xf32>
    %29 = arith.addf %27, %28 : vector<4x32xf32>
    %c0_8 = arith.constant 0 : index
    %c0_9 = arith.constant 0 : index
    %30 = vector.load %arg6[%c0_8, %c0_9] : memref<4x32xf32, #tpu.memory_space<vmem>>, vector<4x32xf32>
    tpu.vector_store %arg6[%c0_8, %c0_9], %29 {strides = array<i32>} : memref<4x32xf32, #tpu.memory_space<vmem>>, vector<4x32xf32>,
    %c0_i32_10 = arith.constant 0 : i32
    %31 = arith.cmpi eq, %arg1, %c0_i32_10 : i32
    %32 = arith.extui %31 : i1 to i32
    %c0_i32_11 = arith.constant 0 : i32
    %33 = arith.cmpi ne, %32, %c0_i32_11 : i32
    scf.if %33 {
      %c0_12 = arith.constant 0 : index
      %c0_13 = arith.constant 0 : index
      %34 = vector.load %arg6[%c0_12, %c0_13] : memref<4x32xf32, #tpu.memory_space<vmem>>, vector<4x32xf32>
      %c0_14 = arith.constant 0 : index
      %c0_15 = arith.constant 0 : index
      %35 = vector.load %arg3[%c0_14, %c0_15] : memref<4x1xf32, #tpu.memory_space<vmem>>, vector<4x1xf32>
      %36 = vector.broadcast %35 : vector<4x1xf32> to vector<4x32xf32>
      %37 = arith.mulf %34, %36 : vector<4x32xf32>
      %c0_16 = arith.constant 0 : index
      %c0_17 = arith.constant 0 : index
      %38 = vector.load %arg5[%c0_16, %c0_17] : memref<4x32xf32, #tpu.memory_space<vmem>>, vector<4x32xf32>
      tpu.vector_store %arg5[%c0_16, %c0_17], %37 {strides = array<i32>} : memref<4x32xf32, #tpu.memory_space<vmem>>, vector<4x32xf32>,
    } else {
    }
    return
  }
  func.func @transform_0(%arg0: i32, %arg1: i32) -> (i32, i32) {
    %c0_i32 = arith.constant 0 : i32
    %c0_i32_0 = arith.constant 0 : i32
    return %c0_i32, %arg1 : i32, i32
  }
  func.func @transform_1(%arg0: i32, %arg1: i32) -> (i32, i32) {
    %c0_i32 = arith.constant 0 : i32
    %c0_i32_0 = arith.constant 0 : i32
    %c0_i32_1 = arith.constant 0 : i32
    return %c0_i32, %c0_i32_0 : i32, i32
  }
  func.func @transform_2(%arg0: i32, %arg1: i32) -> (i32, i32) {
    %c0_i32 = arith.constant 0 : i32
    return %arg1, %arg0 : i32, i32
  }
  func.func @transform_3(%arg0: i32, %arg1: i32) -> (i32, i32) {
    %c0_i32 = arith.constant 0 : i32
    %c0_i32_0 = arith.constant 0 : i32
    return %c0_i32, %arg0 : i32, i32
  }
}

</mosaic_0001>

<llo_original>
// kernel: tpu_custom_call.1
$region0: #{tpu_custom_call.1}
  #allocation0 [shape = 'u32[]', space=smem, size = 0x4, offset = 0x4, fixed_abs, tag = 'smem constant byte address 0x4 - core index']
  #allocation1 [shape = 'u32[144,128]{1,0:T(1,128)}', space=vmem, size = 0x12000, scoped, tag = 'internal scratch']
  #allocation2 [shape = 'f32[4,32]{1,0:T(4,128)}', space=vmem, size = 0x800, scoped, tag = 'scratch operand']
  %s0 = inlined_call_operand.vmem [shape: s32[1,64], index: 0, kind: input, shape index: {}]
  %s1 = inlined_call_operand.vmem [shape: f32[4,1], index: 1, kind: input, shape index: {}]
  %s2 = inlined_call_operand.vmem [shape: f32[64,32], index: 2, kind: input, shape index: {}]
  %s3 = inlined_call_operand.hbm [shape: f32[4,32], index: 3, kind: output, shape index: {}]
  %s4 = sld [smem:[#allocation0]]
  $region30: #{tpu_custom_call.1} parent=0
    _
  %s6 = ssub.s32 1, %s4
  %s7 = scalar_select 0, %s6, %s4
  $region1: #{tpu_custom_call.1} parent=0
    #allocation3 [shape = 'u8[2048]{0}', space=vmem, size = 0x800, scoped, tag = 'output window, operand 0, single buffered']
    #allocation4 [shape = 's32[1]{0}', space=sflag, size = 0x4, scoped, tag = 'scoped memory for tpu_custom_call.1']
    %8 = vsyncpa [#allocation4], 0
    // Predicated region
    $region2: #{tpu_custom_call.1} parent=1 // pred_check
      _
    $region3: #{tpu_custom_call.1} parent=1 // pred_check_branch
      %10 = sbr.rel (0) target = $region5
    $region4: #{tpu_custom_call.1} parent=1 // pred_region
      _
    $region5: #{tpu_custom_call.1} parent=1 // pred_fallthru
      _
    // Predicated region
    $region6: #{tpu_custom_call.1} parent=1 // pred_check
      _
    $region7: #{tpu_custom_call.1} parent=1 // pred_check_branch
      %12 = sbr.rel (0) target = $region9
    $region8: #{tpu_custom_call.1} parent=1 // pred_region
      _
    $region9: #{tpu_custom_call.1} parent=1 // pred_fallthru
      _
    // Predicated region
    $region10: #{tpu_custom_call.1} parent=1 // pred_check
      _
    $region11: #{tpu_custom_call.1} parent=1 // pred_check_branch
      %14 = sbr.rel (0) target = $region13
    $region12: #{tpu_custom_call.1} parent=1 // pred_region
      _
    $region13: #{tpu_custom_call.1} parent=1 // pred_fallthru
      _
    %p15 = scmp.eq.s32.totalorder 0, 0
    // Predicated region
    $region14: #{tpu_custom_call.1} parent=1 // pred_check
      %p16 = pneg %p15
    $region15: #{tpu_custom_call.1} parent=1 // pred_check_branch
      %18 = sbr.rel (%p16) target = $region17
    $region16: #{tpu_custom_call.1} parent=1 // pred_region
      %vm19 = vcmask 257024
      %20 = vst.msk [vmem:[#allocation2] sm:$0xf] %vm19, 0.0
    $region17: #{tpu_custom_call.1} parent=1 // pred_fallthru
      _
    %v21 = vld [vmem:[%s2] sm:$0xff]
    %v22 = vld [vmem:[%s2 + $0x8] sm:$0xff]
    %v23 = vld [vmem:[%s2 + $0x10] sm:$0xff]
    %v24 = vld [vmem:[%s2 + $0x18] sm:$0xff]
    %v25 = vld [vmem:[%s2 + $0x20] sm:$0xff]
    %v26 = vld [vmem:[%s2 + $0x28] sm:$0xff]
    %v27 = vld [vmem:[%s2 + $0x30] sm:$0xff]
    %v28 = vld [vmem:[%s2 + $0x38] sm:$0xff]
    %v29 = vld [vmem:[%s2 + $0x40] sm:$0xff]
    %v30 = vld [vmem:[%s2 + $0x48] sm:$0xff]
    %v31 = vld [vmem:[%s2 + $0x50] sm:$0xff]
    %v32 = vld [vmem:[%s2 + $0x58] sm:$0xff]
    %v33 = vld [vmem:[%s2 + $0x60] sm:$0xff]
    %v34 = vld [vmem:[%s2 + $0x68] sm:$0xff]
    %v35 = vld [vmem:[%s2 + $0x70] sm:$0xff]
    %v36 = vld [vmem:[%s2 + $0x78] sm:$0xff]
    %v37 = vld [vmem:[%s0] sm:$0x1]
    %v38 = vlaneseq
    %v39 = vshrl.u32 %v38, 7
    %v40 = vlaneseq
    %v41 = vshrl.u32 %v40, 7
    %v42 = vsub.s32 0, %v41
    %v43 = vrot.slane %v37, %v42
    %vm44 = vcmp.eq.s32.totalorder %v39, %v43
    %s45 = smul.u32 0, 128
    %v46 = vlaneseq
    %v47 = vand.u32 %v46, 127
    %v48 = vstv %s45
    %v49 = vadd.s32 %v48, %v47
    %vm50 = vcmp.lt.s32.totalorder %v49, 64
    %v51 = vadd.s32 %v39, 8
    %v52 = vadd.s32 %v39, 16
    %v53 = vadd.s32 %v39, 24
    %v54 = vadd.s32 %v39, 32
    %v55 = vadd.s32 %v39, 40
    %v56 = vadd.s32 %v39, 48
    %v57 = vadd.s32 %v39, 56
    %v58 = vadd.s32 %v39, 64
    %v59 = vadd.s32 %v39, 72
    %v60 = vadd.s32 %v39, 80
    %v61 = vadd.s32 %v39, 88
    %v62 = vadd.s32 %v39, 96
    %v63 = vadd.s32 %v39, 104
    %v64 = vadd.s32 %v39, 112
    %v65 = vadd.s32 %v39, 120
    %v66 = vadd.s32 %v48, %v39
    %v67 = vadd.s32 %v48, %v51
    %v68 = vadd.s32 %v48, %v52
    %v69 = vadd.s32 %v48, %v53
    %v70 = vadd.s32 %v48, %v54
    %v71 = vadd.s32 %v48, %v55
    %v72 = vadd.s32 %v48, %v56
    %v73 = vadd.s32 %v48, %v57
    %v74 = vadd.s32 %v48, %v58
    %v75 = vadd.s32 %v48, %v59
    %v76 = vadd.s32 %v48, %v60
    %v77 = vadd.s32 %v48, %v61
    %v78 = vadd.s32 %v48, %v62
    %v79 = vadd.s32 %v48, %v63
    %v80 = vadd.s32 %v48, %v64
    %v81 = vadd.s32 %v48, %v65
    %vm82 = vcmp.lt.s32.totalorder %v66, 64
    %vm83 = vcmp.lt.s32.totalorder %v67, 64
    %vm84 = vcmp.lt.s32.totalorder %v68, 64
    %vm85 = vcmp.lt.s32.totalorder %v69, 64
    %vm86 = vcmp.lt.s32.totalorder %v70, 64
    %vm87 = vcmp.lt.s32.totalorder %v71, 64
    %vm88 = vcmp.lt.s32.totalorder %v72, 64
    %vm89 = vcmp.lt.s32.totalorder %v73, 64
    %vm90 = vcmp.lt.s32.totalorder %v74, 64
    %vm91 = vcmp.lt.s32.totalorder %v75, 64
    %vm92 = vcmp.lt.s32.totalorder %v76, 64
    %vm93 = vcmp.lt.s32.totalorder %v77, 64
    %vm94 = vcmp.lt.s32.totalorder %v78, 64
    %vm95 = vcmp.lt.s32.totalorder %v79, 64
    %vm96 = vcmp.lt.s32.totalorder %v80, 64
    %vm97 = vcmp.lt.s32.totalorder %v81, 64
    %v98 = vsel %vm50, 1, 0
    %vm99 = vcmp.eq.s32.totalorder %v98, 1
    %vm100 = vmand %vm44, %vm99
    %v101 = vsel %vm82, 1, 0
    %v102 = vsel %vm83, 1, 0
    %v103 = vsel %vm84, 1, 0
    %v104 = vsel %vm85, 1, 0
    %v105 = vsel %vm86, 1, 0
    %v106 = vsel %vm87, 1, 0
    %v107 = vsel %vm88, 1, 0
    %v108 = vsel %vm89, 1, 0
    %v109 = vsel %vm90, 1, 0
    %v110 = vsel %vm91, 1, 0
    %v111 = vsel %vm92, 1, 0
    %v112 = vsel %vm93, 1, 0
    %v113 = vsel %vm94, 1, 0
    %v114 = vsel %vm95, 1, 0
    %v115 = vsel %vm96, 1, 0
    %v116 = vsel %vm97, 1, 0
    %vm117 = vcmp.eq.s32.totalorder %v101, 1
    %vm118 = vcmp.eq.s32.totalorder %v102, 1
    %vm119 = vcmp.eq.s32.totalorder %v103, 1
    %vm120 = vcmp.eq.s32.totalorder %v104, 1
    %vm121 = vcmp.eq.s32.totalorder %v105, 1
    %vm122 = vcmp.eq.s32.totalorder %v106, 1
    %vm123 = vcmp.eq.s32.totalorder %v107, 1
    %vm124 = vcmp.eq.s32.totalorder %v108, 1
    %vm125 = vcmp.eq.s32.totalorder %v109, 1
    %vm126 = vcmp.eq.s32.totalorder %v110, 1
    %vm127 = vcmp.eq.s32.totalorder %v111, 1
    %vm128 = vcmp.eq.s32.totalorder %v112, 1
    %vm129 = vcmp.eq.s32.totalorder %v113, 1
    %vm130 = vcmp.eq.s32.totalorder %v114, 1
    %vm131 = vcmp.eq.s32.totalorder %v115, 1
    %vm132 = vcmp.eq.s32.totalorder %v116, 1
    %v133 = vsel %vm117, %v21, 0.0
    %v134 = vsel %vm118, %v22, 0.0
    %v135 = vsel %vm119, %v23, 0.0
    %v136 = vsel %vm120, %v24, 0.0
    %v137 = vsel %vm121, %v25, 0.0
    %v138 = vsel %vm122, %v26, 0.0
    %v139 = vsel %vm123, %v27, 0.0
    %v140 = vsel %vm124, %v28, 0.0
    %v141 = vsel %vm125, %v29, 0.0
    %v142 = vsel %vm126, %v30, 0.0
    %v143 = vsel %vm127, %v31, 0.0
    %v144 = vsel %vm128, %v32, 0.0
    %v145 = vsel %vm129, %v33, 0.0
    %v146 = vsel %vm130, %v34, 0.0
    %v147 = vsel %vm131, %v35, 0.0
    %v148 = vsel %vm132, %v36, 0.0
    %v149 = vsel %vm100, 1, 0
    %v150 = vcvt.s32.f32 %v149
    %v151 = vld [vmem:[#allocation2] sm:$0xf]
    %152 = vmatprep.subr.mxu0 0.0
    %153 = vmatpush1.msra.mxu0 %v133
    %154 = vmatprep.subr.mxu0 0.0
    %155 = vmatpush1.msra.mxu0 %v134
    %156 = vmatprep.subr.mxu0 0.0
    %157 = vmatpush1.msra.mxu0 %v135
    %158 = vmatprep.subr.mxu0 0.0
    %159 = vmatpush1.msra.mxu0 %v136
    %160 = vmatprep.subr.mxu0 0.0
    %161 = vmatpush1.msra.mxu0 %v137
    %162 = vmatprep.subr.mxu0 0.0
    %163 = vmatpush1.msra.mxu0 %v138
    %164 = vmatprep.subr.mxu0 0.0
    %165 = vmatpush1.msra.mxu0 %v139
    %166 = vmatprep.subr.mxu0 0.0
    %167 = vmatpush1.msra.mxu0 %v140
    %168 = vmatprep.subr.mxu0 0.0
    %169 = vmatpush1.msra.mxu0 %v141
    %170 = vmatprep.subr.mxu0 0.0
    %171 = vmatpush1.msra.mxu0 %v142
    %172 = vmatprep.subr.mxu0 0.0
    %173 = vmatpush1.msra.mxu0 %v143
    %174 = vmatprep.subr.mxu0 0.0
    %175 = vmatpush1.msra.mxu0 %v144
    %176 = vmatprep.subr.mxu0 0.0
    %177 = vmatpush1.msra.mxu0 %v145
    %178 = vmatprep.subr.mxu0 0.0
    %179 = vmatpush1.msra.mxu0 %v146
    %180 = vmatprep.subr.mxu0 0.0
    %181 = vmatpush1.msra.mxu0 %v147
    %182 = vmatprep.subr.mxu0 0.0
    %183 = vmatpush1.msra.mxu0 %v148
    %184 = vmatprep.subr.mxu0 0.0
    %185 = vmatpush1.msra.mxu0 0.0
    %186 = vmatprep.subr.mxu0 0.0
    %187 = vmatpush1.msra.mxu0 0.0
    %188 = vmatprep.subr.mxu0 0.0
    %189 = vmatpush1.msra.mxu0 0.0
    %190 = vmatprep.subr.mxu0 0.0
    %191 = vmatpush1.msra.mxu0 0.0
    %192 = vmatprep.subr.mxu0 0.0
    %193 = vmatpush1.msra.mxu0 0.0
    %194 = vmatprep.subr.mxu0 0.0
    %195 = vmatpush1.msra.mxu0 0.0
    %196 = vmatprep.subr.mxu0 0.0
    %197 = vmatpush1.msra.mxu0 0.0
    %198 = vmatprep.subr.mxu0 0.0
    %199 = vmatpush1.msra.mxu0 0.0
    %200 = vmatprep.subr.mxu0 0.0
    %201 = vmatpush1.msra.mxu0 0.0
    %202 = vmatprep.subr.mxu0 0.0
    %203 = vmatpush1.msra.mxu0 0.0
    %204 = vmatprep.subr.mxu0 0.0
    %205 = vmatpush1.msra.mxu0 0.0
    %206 = vmatprep.subr.mxu0 0.0
    %207 = vmatpush1.msra.mxu0 0.0
    %208 = vmatprep.subr.mxu0 0.0
    %209 = vmatpush1.msra.mxu0 0.0
    %210 = vmatprep.subr.mxu0 0.0
    %211 = vmatpush1.msra.mxu0 0.0
    %212 = vmatprep.subr.mxu0 0.0
    %213 = vmatpush1.msra.mxu0 0.0
    %214 = vmatprep.subr.mxu0 0.0
    %215 = vmatpush1.msra.mxu0 0.0
    %216 = vmatprep.mubr.f32.mxu0 0.0
    %217 = vmatmul.mubr.f32.gmra.mrb[0].mxu0 %v150
    %v218 = vpop.f32.mrb[0].mxu0
    %v219 = vadd.f32 0.0, %v218
    %v220 = vpop.f32.mrb[0].mxu0
    %221 = vdwg.mxu0
    %v222 = vadd.f32 %v151, %v219
    %vm223 = vcmask 257024
    %224 = vst.msk [vmem:[#allocation2] sm:$0xf] %vm223, %v222
    // Predicated region
    $region18: #{tpu_custom_call.1} parent=1 // pred_check
      %p225 = pneg %p15
    $region19: #{tpu_custom_call.1} parent=1 // pred_check_branch
      %227 = sbr.rel (%p225) target = $region21
    $region20: #{tpu_custom_call.1} parent=1 // pred_region
      %v228 = vld [vmem:[#allocation2] sm:$0xf]
      %v229 = vld [vmem:[%s1] sm:$0xf]
      %231 = vset.pattern.permute.xlu0 0
      %232 = vperm.xlu0 %231, %v229
      %v233 = vpop.permute.xlu0 %232
      %v235 = vmul.f32 %v228, %v233
      %236 = vst.msk [vmem:[#allocation3] sm:$0xf] %vm223, %v235
    $region21: #{tpu_custom_call.1} parent=1 // pred_fallthru
      _
    // Predicated region
    $region22: #{tpu_custom_call.1} parent=1 // pred_check
      _
    $region23: #{tpu_custom_call.1} parent=1 // pred_check_branch
      %238 = sbr.rel (0) target = $region25
    $region24: #{tpu_custom_call.1} parent=1 // pred_region
      %s240 = ssub.s32 64, 64
      %241 = vsyncadd [#allocation4], %s240
      %s243 = sshll.u32 [#allocation3], 4
      %s244 = int_to_ptr.vmem [resolvable:$true] %s243
      %246 = dma.vmem_to_hbm [thread:$0]  %s244, 64, %s3, [#allocation4]
    $region25: #{tpu_custom_call.1} parent=1 // pred_fallthru
      _
    // Predicated region
    $region26: #{tpu_custom_call.1} parent=1 // pred_check
      _
    $region27: #{tpu_custom_call.1} parent=1 // pred_check_branch
      %248 = sbr.rel (0) target = $region29
    $region28: #{tpu_custom_call.1} parent=1 // pred_region
      %249 = dma.done [#allocation4], 64
    $region29: #{tpu_custom_call.1} parent=1 // pred_fallthru
      _
    %250 = vsyncpa [#allocation4], 1

</llo_original>
